<compile_context>
chip_gen: v6e
topology: v6e:2x2x1
jax: 0.10.0
libtpu: 0.0.40
codegen_flags: <defaults>
</compile_context>

<pallas_src>
import functools

import jax
import jax.numpy as jnp
from jax.experimental import pallas as pl
from jax.experimental.pallas import tpu as pltpu

# ----------------------------- model config (small) -------------------------
DIS_FEAFIELD_SIZE = [10, 20, 30]          # vocab size per categorical feature
DIS_FEA_NUM = len(DIS_FEAFIELD_SIZE)      # 3 categorical features
CONTI_FEA_NUM = 2                         # 2 continuous features
FEATURE_NUM = DIS_FEA_NUM + CONTI_FEA_NUM
EMBEDDING_SIZE = 32
NUM_CROSS = 6
DEEP_OUT_DIMS = 4
HIDDEN_UNITS = [32, 32]
INPUT_DIMS = DIS_FEA_NUM * EMBEDDING_SIZE + CONTI_FEA_NUM   # 98
D_PAD = 128                                                 # lane-padded width
BATCH = 8


def _round_up(n, m):
    return ((n + m - 1) // m) * m


# ------------------------------- Pallas kernel ------------------------------
def dcn_kernel(x_ref, w1_ref, b1_ref, w2_ref, b2_ref, wct_ref, bc_ref,
               wfx_ref, w3f_ref, bh_ref, out_ref):
    """One (TB, 128) batch tile; all weights resident in VMEM."""
    x = x_ref[...]                                                   # (TB, 128)

    # ---- deep part: 128 -> 32 -> 32 (last deep layer folded into the head) --
    h = jnp.dot(x, w1_ref[...], preferred_element_type=jnp.float32) + b1_ref[...]
    h = jnp.maximum(h, 0.0)
    h = jnp.dot(h, w2_ref[...], preferred_element_type=jnp.float32) + b2_ref[...]
    h = jnp.maximum(h, 0.0)                                          # (TB, 32)

    # ---- cross net: x_{l+1} = x0 * (x_l . w_l) + b_l + x_l ------------------
    # Lane reduction done on the MXU (dot against one column of wc_t) to keep
    # the XLU/VPU off the 6-deep serial critical path. Unrolled on purpose.
    wct = wct_ref[...]                                               # (128, L)
    bc = bc_ref[...]                                                 # (L, 128)
    xi = x
    for l in range(NUM_CROSS):
        xw = jnp.dot(xi, wct[:, l:l + 1],
                     preferred_element_type=jnp.float32)             # (TB, 1)
        xi = x * xw + bc[l:l + 1, :] + xi                            # (TB, 128)

    # ---- fused final linear, transposed so the output row is lane-dense ----
    # z_row = wfx^T @ xi^T + w3f^T @ h^T + b  (computed as A @ B^T matmuls)
    zc = jax.lax.dot_general(wfx_ref[...], xi, (((1,), (1,)), ((), ())),
                             preferred_element_type=jnp.float32)     # (8, TB)
    zd = jax.lax.dot_general(w3f_ref[...], h, (((1,), (1,)), ((), ())),
                             preferred_element_type=jnp.float32)     # (8, TB)
    z = (zc + zd)[0:1, :] + bh_ref[...]                              # (1, TB)
    out_ref[...] = jax.nn.sigmoid(z)


@functools.partial(jax.jit, static_argnames=("tb",))
def dcn_pallas(inputs, w1, b1, w2, b2, wct, bc, wfx8, w3f8, bh, *, tb):
    b_pad, d = inputs.shape
    assert d == D_PAD and b_pad % tb == 0
    grid = (b_pad // tb,)

    def const2(i):                      # weights: resident, never re-fetched
        return (0, 0)

    in_specs = [
        pl.BlockSpec((tb, D_PAD), lambda i: (i, 0)),            # x tile
        pl.BlockSpec(w1.shape, const2),
        pl.BlockSpec(b1.shape, const2),
        pl.BlockSpec(w2.shape, const2),
        pl.BlockSpec(b2.shape, const2),
        pl.BlockSpec(wct.shape, const2),
        pl.BlockSpec(bc.shape, const2),
        pl.BlockSpec(wfx8.shape, const2),
        pl.BlockSpec(w3f8.shape, const2),
        pl.BlockSpec(bh.shape, const2),
    ]
    out_specs = pl.BlockSpec((1, tb), lambda i: (0, i))         # lane-dense row

    return pl.pallas_call(
        dcn_kernel,
        out_shape=jax.ShapeDtypeStruct((1, b_pad), jnp.float32),
        grid=grid,
        in_specs=in_specs,
        out_specs=out_specs,
        compiler_params=pltpu.CompilerParams(
            dimension_semantics=("parallel",)),
    )(inputs, w1, b1, w2, b2, wct, bc, wfx8, w3f8, bh)


# ------------------------------ parameter init -------------------------------
def init_params(key):
    """Parameters in the original (PyTorch-equivalent) layout."""
    keys = jax.random.split(key, 16)
    s = 0.1

    def nrm(k, shape):
        return jax.random.normal(k, shape, dtype=jnp.float32) * s

    emb_tables = [nrm(keys[i], (sz, EMBEDDING_SIZE))
                  for i, sz in enumerate(DIS_FEAFIELD_SIZE)]
    ki = len(DIS_FEAFIELD_SIZE)

    w1 = nrm(keys[ki + 0], (INPUT_DIMS, HIDDEN_UNITS[0]))
    b1 = nrm(keys[ki + 1], (1, HIDDEN_UNITS[0]))
    w2 = nrm(keys[ki + 2], (HIDDEN_UNITS[0], HIDDEN_UNITS[1]))
    b2 = nrm(keys[ki + 3], (1, HIDDEN_UNITS[1]))
    w3 = nrm(keys[ki + 4], (HIDDEN_UNITS[1], DEEP_OUT_DIMS))
    b3 = nrm(keys[ki + 5], (1, DEEP_OUT_DIMS))

    wc = nrm(keys[ki + 6], (NUM_CROSS, INPUT_DIMS))
    bc = nrm(keys[ki + 7], (NUM_CROSS, INPUT_DIMS))

    wfx = nrm(keys[ki + 8], (INPUT_DIMS, 1))
    wfd = nrm(keys[ki + 9], (DEEP_OUT_DIMS, 1))
    bf = nrm(keys[ki + 10], (1, 1))

    return emb_tables, (w1, b1, w2, b2, w3, b3, wc, bc, wfx, wfd, bf)


def prepare_kernel_params(dense_params):
    """Pad feature axis to 128, pre-transpose cross weights, fold w3@wfd."""
    (w1, b1, w2, b2, w3, b3, wc, bc, wfx, wfd, bf) = dense_params
    pad = D_PAD - INPUT_DIMS

    w1p = jnp.pad(w1, ((0, pad), (0, 0)))                 # (128, 32), pad rows=0
    wct = jnp.pad(wc, ((0, 0), (0, pad))).T               # (128, L),  pad rows=0
    bcp = jnp.pad(bc, ((0, 0), (0, pad)))                 # (L, 128),  pad lanes=0

    wfxp = jnp.pad(wfx, ((0, pad), (0, 0)))               # (128, 1)
    wfx8 = jnp.zeros((8, D_PAD), jnp.float32).at[0].set(wfxp[:, 0])

    w3f = w3 @ wfd                                        # (32, 1)  exact fold
    w3f8 = jnp.zeros((8, HIDDEN_UNITS[1]), jnp.float32).at[0].set(w3f[:, 0])
    bh = b3 @ wfd + bf                                    # (1, 1)

    return (w1p, b1, w2, b2, wct, bcp, wfx8, w3f8, bh)


# ------------------------------ forward passes --------------------------------
def dcn_forward(X, emb_tables, kernel_params):
    B = X.shape[0]
    # --- glue: embedding gather + dim=1 concat (plain JAX) ---
    embeds = [emb_tables[i][X[:, i].astype(jnp.int32)] for i in range(DIS_FEA_NUM)]
    x = jnp.concatenate(embeds + [X[:, DIS_FEA_NUM:]], axis=1).astype(jnp.float32)
    # lane-pad features to 128, pad batch to a multiple of the tile size
    x = jnp.pad(x, ((0, 0), (0, D_PAD - INPUT_DIMS)))
    tb = min(256, _round_up(max(B, 1), 8))
    b_pad = _round_up(B, tb)
    x = jnp.pad(x, ((0, b_pad - B), (0, 0)))
    out_row = dcn_pallas(x, *kernel_params, tb=tb)        # (1, b_pad)
    return out_row.reshape(-1, 1)[:B]


def dcn_reference(X, emb_tables, dense_params):
    """Pure-JAX reference in the original (unfolded, unpadded) parameterization."""
    (w1, b1, w2, b2, w3, b3, wc, bc, wfx, wfd, bf) = dense_params
    embeds = [emb_tables[i][X[:, i].astype(jnp.int32)] for i in range(DIS_FEA_NUM)]
    x = jnp.concatenate(embeds + [X[:, DIS_FEA_NUM:]], axis=1).astype(jnp.float32)
    h = jax.nn.relu(x @ w1 + b1)
    h = jax.nn.relu(h @ w2 + b2)
    deep = h @ w3 + b3
    xi = x
    for l in range(NUM_CROSS):
        xw = jnp.sum(xi * wc[l], axis=-1, keepdims=True)
        xi = x * xw + bc[l] + xi
    z = xi @ wfx + deep @ wfd + bf
    return jax.nn.sigmoid(z)


# ---------------------------------- main -------------------------------------
if __name__ == "__main__":
    key = jax.random.PRNGKey(0)
    k_param, k_idx, k_cont = jax.random.split(key, 3)

    emb_tables, dense_params = init_params(k_param)
    kernel_params = prepare_kernel_params(dense_params)

    # Build input X: first DIS_FEA_NUM columns are categorical ids (as floats,
    # matching the torch `.long()` cast), rest are continuous features.
    idx_keys = jax.random.split(k_idx, DIS_FEA_NUM)
    idx_cols = [
        jax.random.randint(idx_keys[i], (BATCH, 1), 0, sz).astype(jnp.float32)
        for i, sz in enumerate(DIS_FEAFIELD_SIZE)
    ]
    cont = jax.random.normal(k_cont, (BATCH, CONTI_FEA_NUM), dtype=jnp.float32)
    X = jnp.concatenate(idx_cols + [cont], axis=1)                   # (B, 5)

    out = dcn_forward(X, emb_tables, kernel_params)
    out = jax.block_until_ready(out)
    assert out.shape == (BATCH, 1)
    assert bool(jnp.all(jnp.isfinite(out)))

    ref = dcn_reference(X, emb_tables, dense_params)
    assert bool(jnp.allclose(out, ref, atol=1e-3, rtol=1e-3))

    print("KERNEL_OK")
</pallas_src>

<mosaic_0001>
module attributes {stable_mosaic.version = 11 : i64} {
  func.func @dcn_kernel(%arg0: i32, %arg1: memref<8x128xf32, #tpu.memory_space<vmem>>, %arg2: memref<128x32xf32, #tpu.memory_space<vmem>>, %arg3: memref<1x32xf32, #tpu.memory_space<vmem>>, %arg4: memref<32x32xf32, #tpu.memory_space<vmem>>, %arg5: memref<1x32xf32, #tpu.memory_space<vmem>>, %arg6: memref<128x6xf32, #tpu.memory_space<vmem>>, %arg7: memref<6x128xf32, #tpu.memory_space<vmem>>, %arg8: memref<8x128xf32, #tpu.memory_space<vmem>>, %arg9: memref<8x32xf32, #tpu.memory_space<vmem>>, %arg10: memref<1x1xf32, #tpu.memory_space<vmem>>, %arg11: memref<1x8xf32, #tpu.memory_space<vmem>>) attributes {dimension_semantics = [#tpu.dimension_semantics<parallel>], iteration_bounds = array<i64: 1>, scalar_prefetch = 0 : i64, scratch_operands = 0 : i64, tpu.core_type = #tpu.core_type<tc>, window_params = [{transform_indices = @transform_0, window_bounds = array<i64: 8, 128>}, {pipeline_mode = #tpu.pipeline_mode<synchronous>, transform_indices = @transform_1, window_bounds = array<i64: 128, 32>}, {pipeline_mode = #tpu.pipeline_mode<synchronous>, transform_indices = @transform_2, window_bounds = array<i64: 1, 32>}, {pipeline_mode = #tpu.pipeline_mode<synchronous>, transform_indices = @transform_3, window_bounds = array<i64: 32, 32>}, {pipeline_mode = #tpu.pipeline_mode<synchronous>, transform_indices = @transform_4, window_bounds = array<i64: 1, 32>}, {pipeline_mode = #tpu.pipeline_mode<synchronous>, transform_indices = @transform_5, window_bounds = array<i64: 128, 6>}, {pipeline_mode = #tpu.pipeline_mode<synchronous>, transform_indices = @transform_6, window_bounds = array<i64: 6, 128>}, {pipeline_mode = #tpu.pipeline_mode<synchronous>, transform_indices = @transform_7, window_bounds = array<i64: 8, 128>}, {pipeline_mode = #tpu.pipeline_mode<synchronous>, transform_indices = @transform_8, window_bounds = array<i64: 8, 32>}, {pipeline_mode = #tpu.pipeline_mode<synchronous>, transform_indices = @transform_9, window_bounds = array<i64: 1, 1>}, {transform_indices = @transform_10, window_bounds = array<i64: 1, 8>}]} {
    %c0 = arith.constant 0 : index
    %c0_0 = arith.constant 0 : index
    %0 = vector.load %arg1[%c0, %c0_0] : memref<8x128xf32, #tpu.memory_space<vmem>>, vector<8x128xf32>
    %c0_1 = arith.constant 0 : index
    %c0_2 = arith.constant 0 : index
    %1 = vector.load %arg2[%c0_1, %c0_2] : memref<128x32xf32, #tpu.memory_space<vmem>>, vector<128x32xf32>
    %cst = arith.constant dense<0.000000e+00> : vector<8x32xf32>
    %2 = tpu.matmul %0, %1, %cst {dimension_numbers = #tpu.dot_dimension_numbers<[1], [0], [0], [1], [0, 0, 1, 1], [], []>} : vector<8x128xf32>, vector<128x32xf32>, vector<8x32xf32> -> vector<8x32xf32>
    %c0_3 = arith.constant 0 : index
    %c0_4 = arith.constant 0 : index
    %3 = vector.load %arg3[%c0_3, %c0_4] : memref<1x32xf32, #tpu.memory_space<vmem>>, vector<1x32xf32>
    %4 = vector.broadcast %3 : vector<1x32xf32> to vector<8x32xf32>
    %5 = arith.addf %2, %4 : vector<8x32xf32>
    %cst_5 = arith.constant 0.000000e+00 : f32
    %6 = vector.broadcast %cst_5 : f32 to vector<8x32xf32>
    %7 = arith.maximumf %5, %6 : vector<8x32xf32>
    %c0_6 = arith.constant 0 : index
    %c0_7 = arith.constant 0 : index
    %8 = vector.load %arg4[%c0_6, %c0_7] : memref<32x32xf32, #tpu.memory_space<vmem>>, vector<32x32xf32>
    %cst_8 = arith.constant dense<0.000000e+00> : vector<8x32xf32>
    %9 = tpu.matmul %7, %8, %cst_8 {dimension_numbers = #tpu.dot_dimension_numbers<[1], [0], [0], [1], [0, 0, 1, 1], [], []>} : vector<8x32xf32>, vector<32x32xf32>, vector<8x32xf32> -> vector<8x32xf32>
    %c0_9 = arith.constant 0 : index
    %c0_10 = arith.constant 0 : index
    %10 = vector.load %arg5[%c0_9, %c0_10] : memref<1x32xf32, #tpu.memory_space<vmem>>, vector<1x32xf32>
    %11 = vector.broadcast %10 : vector<1x32xf32> to vector<8x32xf32>
    %12 = arith.addf %9, %11 : vector<8x32xf32>
    %cst_11 = arith.constant 0.000000e+00 : f32
    %13 = vector.broadcast %cst_11 : f32 to vector<8x32xf32>
    %14 = arith.maximumf %12, %13 : vector<8x32xf32>
    %c0_12 = arith.constant 0 : index
    %c0_13 = arith.constant 0 : index
    %15 = vector.load %arg6[%c0_12, %c0_13] : memref<128x6xf32, #tpu.memory_space<vmem>>, vector<128x6xf32>
    %c0_14 = arith.constant 0 : index
    %c0_15 = arith.constant 0 : index
    %16 = vector.load %arg7[%c0_14, %c0_15] : memref<6x128xf32, #tpu.memory_space<vmem>>, vector<6x128xf32>
    %17 = vector.extract_strided_slice %15 {offsets = [0, 0], sizes = [128, 1], strides = [1, 1]} : vector<128x6xf32> to vector<128x1xf32>
    %cst_16 = arith.constant dense<0.000000e+00> : vector<8x1xf32>
    %18 = tpu.matmul %0, %17, %cst_16 {dimension_numbers = #tpu.dot_dimension_numbers<[1], [0], [0], [1], [0, 0, 1, 1], [], []>} : vector<8x128xf32>, vector<128x1xf32>, vector<8x1xf32> -> vector<8x1xf32>
    %19 = vector.broadcast %18 : vector<8x1xf32> to vector<8x128xf32>
    %20 = arith.mulf %0, %19 : vector<8x128xf32>
    %21 = vector.extract_strided_slice %16 {offsets = [0, 0], sizes = [1, 128], strides = [1, 1]} : vector<6x128xf32> to vector<1x128xf32>
    %22 = vector.broadcast %21 : vector<1x128xf32> to vector<8x128xf32>
    %23 = arith.addf %20, %22 : vector<8x128xf32>
    %24 = arith.addf %23, %0 : vector<8x128xf32>
    %25 = vector.extract_strided_slice %15 {offsets = [0, 1], sizes = [128, 1], strides = [1, 1]} : vector<128x6xf32> to vector<128x1xf32>
    %cst_17 = arith.constant dense<0.000000e+00> : vector<8x1xf32>
    %26 = tpu.matmul %24, %25, %cst_17 {dimension_numbers = #tpu.dot_dimension_numbers<[1], [0], [0], [1], [0, 0, 1, 1], [], []>} : vector<8x128xf32>, vector<128x1xf32>, vector<8x1xf32> -> vector<8x1xf32>
    %27 = vector.broadcast %26 : vector<8x1xf32> to vector<8x128xf32>
    %28 = arith.mulf %0, %27 : vector<8x128xf32>
    %29 = vector.extract_strided_slice %16 {offsets = [1, 0], sizes = [1, 128], strides = [1, 1]} : vector<6x128xf32> to vector<1x128xf32>
    %30 = vector.broadcast %29 : vector<1x128xf32> to vector<8x128xf32>
    %31 = arith.addf %28, %30 : vector<8x128xf32>
    %32 = arith.addf %31, %24 : vector<8x128xf32>
    %33 = vector.extract_strided_slice %15 {offsets = [0, 2], sizes = [128, 1], strides = [1, 1]} : vector<128x6xf32> to vector<128x1xf32>
    %cst_18 = arith.constant dense<0.000000e+00> : vector<8x1xf32>
    %34 = tpu.matmul %32, %33, %cst_18 {dimension_numbers = #tpu.dot_dimension_numbers<[1], [0], [0], [1], [0, 0, 1, 1], [], []>} : vector<8x128xf32>, vector<128x1xf32>, vector<8x1xf32> -> vector<8x1xf32>
    %35 = vector.broadcast %34 : vector<8x1xf32> to vector<8x128xf32>
    %36 = arith.mulf %0, %35 : vector<8x128xf32>
    %37 = vector.extract_strided_slice %16 {offsets = [2, 0], sizes = [1, 128], strides = [1, 1]} : vector<6x128xf32> to vector<1x128xf32>
    %38 = vector.broadcast %37 : vector<1x128xf32> to vector<8x128xf32>
    %39 = arith.addf %36, %38 : vector<8x128xf32>
    %40 = arith.addf %39, %32 : vector<8x128xf32>
    %41 = vector.extract_strided_slice %15 {offsets = [0, 3], sizes = [128, 1], strides = [1, 1]} : vector<128x6xf32> to vector<128x1xf32>
    %cst_19 = arith.constant dense<0.000000e+00> : vector<8x1xf32>
    %42 = tpu.matmul %40, %41, %cst_19 {dimension_numbers = #tpu.dot_dimension_numbers<[1], [0], [0], [1], [0, 0, 1, 1], [], []>} : vector<8x128xf32>, vector<128x1xf32>, vector<8x1xf32> -> vector<8x1xf32>
    %43 = vector.broadcast %42 : vector<8x1xf32> to vector<8x128xf32>
    %44 = arith.mulf %0, %43 : vector<8x128xf32>
    %45 = vector.extract_strided_slice %16 {offsets = [3, 0], sizes = [1, 128], strides = [1, 1]} : vector<6x128xf32> to vector<1x128xf32>
    %46 = vector.broadcast %45 : vector<1x128xf32> to vector<8x128xf32>
    %47 = arith.addf %44, %46 : vector<8x128xf32>
    %48 = arith.addf %47, %40 : vector<8x128xf32>
    %49 = vector.extract_strided_slice %15 {offsets = [0, 4], sizes = [128, 1], strides = [1, 1]} : vector<128x6xf32> to vector<128x1xf32>
    %cst_20 = arith.constant dense<0.000000e+00> : vector<8x1xf32>
    %50 = tpu.matmul %48, %49, %cst_20 {dimension_numbers = #tpu.dot_dimension_numbers<[1], [0], [0], [1], [0, 0, 1, 1], [], []>} : vector<8x128xf32>, vector<128x1xf32>, vector<8x1xf32> -> vector<8x1xf32>
    %51 = vector.broadcast %50 : vector<8x1xf32> to vector<8x128xf32>
    %52 = arith.mulf %0, %51 : vector<8x128xf32>
    %53 = vector.extract_strided_slice %16 {offsets = [4, 0], sizes = [1, 128], strides = [1, 1]} : vector<6x128xf32> to vector<1x128xf32>
    %54 = vector.broadcast %53 : vector<1x128xf32> to vector<8x128xf32>
    %55 = arith.addf %52, %54 : vector<8x128xf32>
    %56 = arith.addf %55, %48 : vector<8x128xf32>
    %57 = vector.extract_strided_slice %15 {offsets = [0, 5], sizes = [128, 1], strides = [1, 1]} : vector<128x6xf32> to vector<128x1xf32>
    %cst_21 = arith.constant dense<0.000000e+00> : vector<8x1xf32>
    %58 = tpu.matmul %56, %57, %cst_21 {dimension_numbers = #tpu.dot_dimension_numbers<[1], [0], [0], [1], [0, 0, 1, 1], [], []>} : vector<8x128xf32>, vector<128x1xf32>, vector<8x1xf32> -> vector<8x1xf32>
    %59 = vector.broadcast %58 : vector<8x1xf32> to vector<8x128xf32>
    %60 = arith.mulf %0, %59 : vector<8x128xf32>
    %61 = vector.extract_strided_slice %16 {offsets = [5, 0], sizes = [1, 128], strides = [1, 1]} : vector<6x128xf32> to vector<1x128xf32>
    %62 = vector.broadcast %61 : vector<1x128xf32> to vector<8x128xf32>
    %63 = arith.addf %60, %62 : vector<8x128xf32>
    %64 = arith.addf %63, %56 : vector<8x128xf32>
    %c0_22 = arith.constant 0 : index
    %c0_23 = arith.constant 0 : index
    %65 = vector.load %arg8[%c0_22, %c0_23] : memref<8x128xf32, #tpu.memory_space<vmem>>, vector<8x128xf32>
    %cst_24 = arith.constant dense<0.000000e+00> : vector<8x8xf32>
    %66 = tpu.matmul %65, %64, %cst_24 {dimension_numbers = #tpu.dot_dimension_numbers<[1], [1], [0], [0], [0, 0, 1, 0], [], []>} : vector<8x128xf32>, vector<8x128xf32>, vector<8x8xf32> -> vector<8x8xf32>
    %c0_25 = arith.constant 0 : index
    %c0_26 = arith.constant 0 : index
    %67 = vector.load %arg9[%c0_25, %c0_26] : memref<8x32xf32, #tpu.memory_space<vmem>>, vector<8x32xf32>
    %cst_27 = arith.constant dense<0.000000e+00> : vector<8x8xf32>
    %68 = tpu.matmul %67, %14, %cst_27 {dimension_numbers = #tpu.dot_dimension_numbers<[1], [1], [0], [0], [0, 0, 1, 0], [], []>} : vector<8x32xf32>, vector<8x32xf32>, vector<8x8xf32> -> vector<8x8xf32>
    %69 = arith.addf %66, %68 : vector<8x8xf32>
    %70 = vector.extract_strided_slice %69 {offsets = [0, 0], sizes = [1, 8], strides = [1, 1]} : vector<8x8xf32> to vector<1x8xf32>
    %c0_28 = arith.constant 0 : index
    %c0_29 = arith.constant 0 : index
    %71 = vector.load %arg10[%c0_28, %c0_29] : memref<1x1xf32, #tpu.memory_space<vmem>>, vector<1x1xf32>
    %72 = vector.broadcast %71 : vector<1x1xf32> to vector<1x8xf32>
    %73 = arith.addf %70, %72 : vector<1x8xf32>
    %74 = arith.negf %73 : vector<1x8xf32>
    %75 = math.exp %74 : vector<1x8xf32>
    %cst_30 = arith.constant 1.000000e+00 : f32
    %76 = vector.broadcast %cst_30 : f32 to vector<1x8xf32>
    %77 = arith.addf %76, %75 : vector<1x8xf32>
    %78 = arith.divf %76, %77 : vector<1x8xf32>
    %c0_31 = arith.constant 0 : index
    %c0_32 = arith.constant 0 : index
    %79 = vector.load %arg11[%c0_31, %c0_32] : memref<1x8xf32, #tpu.memory_space<vmem>>, vector<1x8xf32>
    tpu.vector_store %arg11[%c0_31, %c0_32], %78 {strides = array<i32>} : memref<1x8xf32, #tpu.memory_space<vmem>>, vector<1x8xf32>,
    return
  }
  func.func @transform_0(%arg0: i32) -> (i32, i32) {
    %c0_i32 = arith.constant 0 : i32
    %c0_i32_0 = arith.constant 0 : i32
    return %arg0, %c0_i32 : i32, i32
  }
  func.func @transform_1(%arg0: i32) -> (i32, i32) {
    %c0_i32 = arith.constant 0 : i32
    %c0_i32_0 = arith.constant 0 : i32
    %c0_i32_1 = arith.constant 0 : i32
    return %c0_i32, %c0_i32_0 : i32, i32
  }
  func.func @transform_2(%arg0: i32) -> (i32, i32) {
    %c0_i32 = arith.constant 0 : i32
    %c0_i32_0 = arith.constant 0 : i32
    %c0_i32_1 = arith.constant 0 : i32
    return %c0_i32, %c0_i32_0 : i32, i32
  }
  func.func @transform_3(%arg0: i32) -> (i32, i32) {
    %c0_i32 = arith.constant 0 : i32
    %c0_i32_0 = arith.constant 0 : i32
    %c0_i32_1 = arith.constant 0 : i32
    return %c0_i32, %c0_i32_0 : i32, i32
  }
  func.func @transform_4(%arg0: i32) -> (i32, i32) {
    %c0_i32 = arith.constant 0 : i32
    %c0_i32_0 = arith.constant 0 : i32
    %c0_i32_1 = arith.constant 0 : i32
    return %c0_i32, %c0_i32_0 : i32, i32
  }
  func.func @transform_5(%arg0: i32) -> (i32, i32) {
    %c0_i32 = arith.constant 0 : i32
    %c0_i32_0 = arith.constant 0 : i32
    %c0_i32_1 = arith.constant 0 : i32
    return %c0_i32, %c0_i32_0 : i32, i32
  }
  func.func @transform_6(%arg0: i32) -> (i32, i32) {
    %c0_i32 = arith.constant 0 : i32
    %c0_i32_0 = arith.constant 0 : i32
    %c0_i32_1 = arith.constant 0 : i32
    return %c0_i32, %c0_i32_0 : i32, i32
  }
  func.func @transform_7(%arg0: i32) -> (i32, i32) {
    %c0_i32 = arith.constant 0 : i32
    %c0_i32_0 = arith.constant 0 : i32
    %c0_i32_1 = arith.constant 0 : i32
    return %c0_i32, %c0_i32_0 : i32, i32
  }
  func.func @transform_8(%arg0: i32) -> (i32, i32) {
    %c0_i32 = arith.constant 0 : i32
    %c0_i32_0 = arith.constant 0 : i32
    %c0_i32_1 = arith.constant 0 : i32
    return %c0_i32, %c0_i32_0 : i32, i32
  }
  func.func @transform_9(%arg0: i32) -> (i32, i32) {
    %c0_i32 = arith.constant 0 : i32
    %c0_i32_0 = arith.constant 0 : i32
    %c0_i32_1 = arith.constant 0 : i32
    return %c0_i32, %c0_i32_0 : i32, i32
  }
  func.func @transform_10(%arg0: i32) -> (i32, i32) {
    %c0_i32 = arith.constant 0 : i32
    %c0_i32_0 = arith.constant 0 : i32
    return %c0_i32, %arg0 : i32, i32
  }
}

</mosaic_0001>

<llo_original>
// kernel: dcn_pallas.1
$region0: #{dcn_pallas.1}
  #allocation0 [shape = 'u32[]', space=smem, size = 0x4, offset = 0x4, fixed_abs, tag = 'smem constant byte address 0x4 - core index']
  #allocation1 [shape = 'u32[144,128]{1,0:T(1,128)}', space=vmem, size = 0x12000, scoped, tag = 'internal scratch']
  #allocation2 [shape = 'f32[1,1]{1,0:T(1,128)S(1)}', space=vmem, size = 0x200, scoped, tag = 'scoped memory for dcn_pallas.1']
  %s0 = inlined_call_operand.vmem [shape: f32[8,128], index: 0, kind: input, shape index: {}]
  %s1 = inlined_call_operand.vmem [shape: f32[128,32], index: 1, kind: input, shape index: {}]
  %s2 = inlined_call_operand.vmem [shape: f32[1,32], index: 2, kind: input, shape index: {}]
  %s3 = inlined_call_operand.vmem [shape: f32[32,32], index: 3, kind: input, shape index: {}]
  %s4 = inlined_call_operand.vmem [shape: f32[1,32], index: 4, kind: input, shape index: {}]
  %s5 = inlined_call_operand.vmem [shape: f32[128,6], index: 5, kind: input, shape index: {}]
  %s6 = inlined_call_operand.vmem [shape: f32[6,128], index: 6, kind: input, shape index: {}]
  %s7 = inlined_call_operand.vmem [shape: f32[8,128], index: 7, kind: input, shape index: {}]
  %s8 = inlined_call_operand.vmem [shape: f32[8,32], index: 8, kind: input, shape index: {}]
  %s9 = inlined_call_operand.<no memory space> [shape: f32[1,1], index: 9, kind: input, shape index: {}]
  %s10 = inlined_call_operand.hbm [shape: f32[1,8], index: 10, kind: output, shape index: {}]
  %s11 = sld [smem:[#allocation0]]
  $region50: #{dcn_pallas.1} parent=0
    _
  %s13 = ssub.s32 1, %s11
  %s14 = scalar_select 0, %s13, %s11
  %v15 = vstv %s9
  %16 = vst [vmem:[#allocation2] sm:$0x1] %v15
  $region1: #{dcn_pallas.1} parent=0
    #allocation3 [shape = 'u8[512]{0}', space=vmem, size = 0x400, scoped, tag = 'output window, operand 0, single buffered']
    #allocation4 [shape = 's32[1]{0}', space=sflag, size = 0x4, scoped, tag = 'scoped memory for dcn_pallas.1']
    %17 = vsyncpa [#allocation4], 0
    // Predicated region
    $region2: #{dcn_pallas.1} parent=1 // pred_check
      _
    $region3: #{dcn_pallas.1} parent=1 // pred_check_branch
      %19 = sbr.rel (0) target = $region5
    $region4: #{dcn_pallas.1} parent=1 // pred_region
      _
    $region5: #{dcn_pallas.1} parent=1 // pred_fallthru
      _
    // Predicated region
    $region6: #{dcn_pallas.1} parent=1 // pred_check
      _
    $region7: #{dcn_pallas.1} parent=1 // pred_check_branch
      %21 = sbr.rel (0) target = $region9
    $region8: #{dcn_pallas.1} parent=1 // pred_region
      _
    $region9: #{dcn_pallas.1} parent=1 // pred_fallthru
      _
    // Predicated region
    $region10: #{dcn_pallas.1} parent=1 // pred_check
      _
    $region11: #{dcn_pallas.1} parent=1 // pred_check_branch
      %23 = sbr.rel (0) target = $region13
    $region12: #{dcn_pallas.1} parent=1 // pred_region
      _
    $region13: #{dcn_pallas.1} parent=1 // pred_fallthru
      _
    // Predicated region
    $region14: #{dcn_pallas.1} parent=1 // pred_check
      _
    $region15: #{dcn_pallas.1} parent=1 // pred_check_branch
      %25 = sbr.rel (0) target = $region17
    $region16: #{dcn_pallas.1} parent=1 // pred_region
      _
    $region17: #{dcn_pallas.1} parent=1 // pred_fallthru
      _
    // Predicated region
    $region18: #{dcn_pallas.1} parent=1 // pred_check
      _
    $region19: #{dcn_pallas.1} parent=1 // pred_check_branch
      %27 = sbr.rel (0) target = $region21
    $region20: #{dcn_pallas.1} parent=1 // pred_region
      _
    $region21: #{dcn_pallas.1} parent=1 // pred_fallthru
      _
    // Predicated region
    $region22: #{dcn_pallas.1} parent=1 // pred_check
      _
    $region23: #{dcn_pallas.1} parent=1 // pred_check_branch
      %29 = sbr.rel (0) target = $region25
    $region24: #{dcn_pallas.1} parent=1 // pred_region
      _
    $region25: #{dcn_pallas.1} parent=1 // pred_fallthru
      _
    // Predicated region
    $region26: #{dcn_pallas.1} parent=1 // pred_check
      _
    $region27: #{dcn_pallas.1} parent=1 // pred_check_branch
      %31 = sbr.rel (0) target = $region29
    $region28: #{dcn_pallas.1} parent=1 // pred_region
      _
    $region29: #{dcn_pallas.1} parent=1 // pred_fallthru
      _
    // Predicated region
    $region30: #{dcn_pallas.1} parent=1 // pred_check
      _
    $region31: #{dcn_pallas.1} parent=1 // pred_check_branch
      %33 = sbr.rel (0) target = $region33
    $region32: #{dcn_pallas.1} parent=1 // pred_region
      _
    $region33: #{dcn_pallas.1} parent=1 // pred_fallthru
      _
    // Predicated region
    $region34: #{dcn_pallas.1} parent=1 // pred_check
      _
    $region35: #{dcn_pallas.1} parent=1 // pred_check_branch
      %35 = sbr.rel (0) target = $region37
    $region36: #{dcn_pallas.1} parent=1 // pred_region
      _
    $region37: #{dcn_pallas.1} parent=1 // pred_fallthru
      _
    // Predicated region
    $region38: #{dcn_pallas.1} parent=1 // pred_check
      _
    $region39: #{dcn_pallas.1} parent=1 // pred_check_branch
      %37 = sbr.rel (0) target = $region41
    $region40: #{dcn_pallas.1} parent=1 // pred_region
      _
    $region41: #{dcn_pallas.1} parent=1 // pred_fallthru
      _
    %v38 = vld [vmem:[%s0] sm:$0xff]
    %v39 = vld [vmem:[%s1] sm:$0xff]
    %v40 = vld [vmem:[%s1 + $0x8] sm:$0xff]
    %v41 = vld [vmem:[%s1 + $0x10] sm:$0xff]
    %v42 = vld [vmem:[%s1 + $0x18] sm:$0xff]
    %v43 = vld [vmem:[%s1 + $0x20] sm:$0xff]
    %v44 = vld [vmem:[%s1 + $0x28] sm:$0xff]
    %v45 = vld [vmem:[%s1 + $0x30] sm:$0xff]
    %v46 = vld [vmem:[%s1 + $0x38] sm:$0xff]
    %v47 = vld [vmem:[%s1 + $0x40] sm:$0xff]
    %v48 = vld [vmem:[%s1 + $0x48] sm:$0xff]
    %v49 = vld [vmem:[%s1 + $0x50] sm:$0xff]
    %v50 = vld [vmem:[%s1 + $0x58] sm:$0xff]
    %v51 = vld [vmem:[%s1 + $0x60] sm:$0xff]
    %v52 = vld [vmem:[%s1 + $0x68] sm:$0xff]
    %v53 = vld [vmem:[%s1 + $0x70] sm:$0xff]
    %v54 = vld [vmem:[%s1 + $0x78] sm:$0xff]
    %v55 = vld [vmem:[%s2] sm:$0x1]
    %v57 = vlaneseq
    %v58 = vshrl.u32 %v57, 7
    %v59 = vsub.s32 0, %v58
    %v60 = vrot.slane %v55, %v59
    %62 = vmatprep.subr.mxu0 0.0
    %63 = vmatpush1.msra.mxu0 %v54
    %64 = vmatprep.subr.mxu0 0.0
    %65 = vmatpush1.msra.mxu0 %v53
    %66 = vmatprep.subr.mxu0 0.0
    %67 = vmatpush1.msra.mxu0 %v52
    %68 = vmatprep.subr.mxu0 0.0
    %69 = vmatpush1.msra.mxu0 %v51
    %70 = vmatprep.subr.mxu0 0.0
    %71 = vmatpush1.msra.mxu0 %v50
    %72 = vmatprep.subr.mxu0 0.0
    %73 = vmatpush1.msra.mxu0 %v49
    %74 = vmatprep.subr.mxu0 0.0
    %75 = vmatpush1.msra.mxu0 %v48
    %76 = vmatprep.subr.mxu0 0.0
    %77 = vmatpush1.msra.mxu0 %v47
    %78 = vmatprep.subr.mxu0 0.0
    %79 = vmatpush1.msra.mxu0 %v46
    %80 = vmatprep.subr.mxu0 0.0
    %81 = vmatpush1.msra.mxu0 %v45
    %82 = vmatprep.subr.mxu0 0.0
    %83 = vmatpush1.msra.mxu0 %v44
    %84 = vmatprep.subr.mxu0 0.0
    %85 = vmatpush1.msra.mxu0 %v43
    %86 = vmatprep.subr.mxu0 0.0
    %87 = vmatpush1.msra.mxu0 %v42
    %88 = vmatprep.subr.mxu0 0.0
    %89 = vmatpush1.msra.mxu0 %v41
    %90 = vmatprep.subr.mxu0 0.0
    %91 = vmatpush1.msra.mxu0 %v40
    %92 = vmatprep.subr.mxu0 0.0
    %93 = vmatpush1.msra.mxu0 %v39
    %94 = vmatprep.subr.mxu0 0.0
    %95 = vmatpush2.msra.mxu0 0.0
    %96 = vmatprep.subr.mxu0 0.0
    %97 = vmatpush2.msra.mxu0 0.0
    %98 = vmatprep.subr.mxu0 0.0
    %99 = vmatpush2.msra.mxu0 0.0
    %100 = vmatprep.subr.mxu0 0.0
    %101 = vmatpush2.msra.mxu0 0.0
    %102 = vmatprep.subr.mxu0 0.0
    %103 = vmatpush2.msra.mxu0 0.0
    %104 = vmatprep.subr.mxu0 0.0
    %105 = vmatpush2.msra.mxu0 0.0
    %106 = vmatprep.subr.mxu0 0.0
    %107 = vmatpush2.msra.mxu0 0.0
    %108 = vmatprep.subr.mxu0 0.0
    %109 = vmatpush2.msra.mxu0 0.0
    %110 = vmatprep.subr.mxu0 0.0
    %111 = vmatpush2.msra.mxu0 0.0
    %112 = vmatprep.subr.mxu0 0.0
    %113 = vmatpush2.msra.mxu0 0.0
    %114 = vmatprep.subr.mxu0 0.0
    %115 = vmatpush2.msra.mxu0 0.0
    %116 = vmatprep.subr.mxu0 0.0
    %117 = vmatpush2.msra.mxu0 0.0
    %118 = vmatprep.subr.mxu0 0.0
    %119 = vmatpush2.msra.mxu0 0.0
    %120 = vmatprep.subr.mxu0 0.0
    %121 = vmatpush2.msra.mxu0 0.0
    %122 = vmatprep.subr.mxu0 0.0
    %123 = vmatpush2.msra.mxu0 0.0
    %124 = vmatprep.subr.mxu0 0.0
    %125 = vmatpush2.msra.mxu0 0.0
    %126 = vmatprep.mubr.f32.mxu0 0.0
    %127 = vmatmul.mubr.f32.gmra.mxu0 %v38
    %v128 = vpop.f32.mrf.mxu0
    %v129 = vadd.f32 %v60, %v128
    %v130 = vpop.f32.mrf.mxu0
    %131 = vdwg.mxu0
    %v132 = vmax.f32 %v129, 0.0
    %v133 = vld [vmem:[%s3] sm:$0xff]
    %v134 = vld [vmem:[%s3 + $0x8] sm:$0xff]
    %v135 = vld [vmem:[%s3 + $0x10] sm:$0xff]
    %v136 = vld [vmem:[%s3 + $0x18] sm:$0xff]
    %v137 = vld [vmem:[%s4] sm:$0x1]
    %v139 = vlaneseq
    %v140 = vshrl.u32 %v139, 7
    %v141 = vsub.s32 0, %v140
    %v142 = vrot.slane %v137, %v141
    %vm144 = vcmask 261120
    %v146 = vsel %vm144, %v132, 0
    %148 = vmatprep.subr.mxu0 0.0
    %149 = vmatpush1.msra.mxu0 0.0
    %150 = vmatprep.subr.mxu0 0.0
    %151 = vmatpush1.msra.mxu0 0.0
    %152 = vmatprep.subr.mxu0 0.0
    %153 = vmatpush1.msra.mxu0 0.0
    %154 = vmatprep.subr.mxu0 0.0
    %155 = vmatpush1.msra.mxu0 0.0
    %156 = vmatprep.subr.mxu0 0.0
    %157 = vmatpush1.msra.mxu0 0.0
    %158 = vmatprep.subr.mxu0 0.0
    %159 = vmatpush1.msra.mxu0 0.0
    %160 = vmatprep.subr.mxu0 0.0
    %161 = vmatpush1.msra.mxu0 0.0
    %162 = vmatprep.subr.mxu0 0.0
    %163 = vmatpush1.msra.mxu0 0.0
    %164 = vmatprep.subr.mxu0 0.0
    %165 = vmatpush1.msra.mxu0 0.0
    %166 = vmatprep.subr.mxu0 0.0
    %167 = vmatpush1.msra.mxu0 0.0
    %168 = vmatprep.subr.mxu0 0.0
    %169 = vmatpush1.msra.mxu0 0.0
    %170 = vmatprep.subr.mxu0 0.0
    %171 = vmatpush1.msra.mxu0 0.0
    %172 = vmatprep.subr.mxu0 0.0
    %173 = vmatpush1.msra.mxu0 %v136
    %174 = vmatprep.subr.mxu0 0.0
    %175 = vmatpush1.msra.mxu0 %v135
    %176 = vmatprep.subr.mxu0 0.0
    %177 = vmatpush1.msra.mxu0 %v134
    %178 = vmatprep.subr.mxu0 0.0
    %179 = vmatpush1.msra.mxu0 %v133
    %180 = vmatprep.subr.mxu0 0.0
    %181 = vmatpush2.msra.mxu0 0.0
    %182 = vmatprep.subr.mxu0 0.0
    %183 = vmatpush2.msra.mxu0 0.0
    %184 = vmatprep.subr.mxu0 0.0
    %185 = vmatpush2.msra.mxu0 0.0
    %186 = vmatprep.subr.mxu0 0.0
    %187 = vmatpush2.msra.mxu0 0.0
    %188 = vmatprep.subr.mxu0 0.0
    %189 = vmatpush2.msra.mxu0 0.0
    %190 = vmatprep.subr.mxu0 0.0
    %191 = vmatpush2.msra.mxu0 0.0
    %192 = vmatprep.subr.mxu0 0.0
    %193 = vmatpush2.msra.mxu0 0.0
    %194 = vmatprep.subr.mxu0 0.0
    %195 = vmatpush2.msra.mxu0 0.0
    %196 = vmatprep.subr.mxu0 0.0
    %197 = vmatpush2.msra.mxu0 0.0
    %198 = vmatprep.subr.mxu0 0.0
    %199 = vmatpush2.msra.mxu0 0.0
    %200 = vmatprep.subr.mxu0 0.0
    %201 = vmatpush2.msra.mxu0 0.0
    %202 = vmatprep.subr.mxu0 0.0
    %203 = vmatpush2.msra.mxu0 0.0
    %204 = vmatprep.subr.mxu0 0.0
    %205 = vmatpush2.msra.mxu0 0.0
    %206 = vmatprep.subr.mxu0 0.0
    %207 = vmatpush2.msra.mxu0 0.0
    %208 = vmatprep.subr.mxu0 0.0
    %209 = vmatpush2.msra.mxu0 0.0
    %210 = vmatprep.subr.mxu0 0.0
    %211 = vmatpush2.msra.mxu0 0.0
    %212 = vmatprep.mubr.f32.mxu0 0.0
    %213 = vmatmul.mubr.f32.gmra.mxu0 %v146
    %v214 = vpop.f32.mrf.mxu0
    %v215 = vadd.f32 %v142, %v214
    %v216 = vpop.f32.mrf.mxu0
    %217 = vdwg.mxu0
    %v218 = vmax.f32 %v215, 0.0
    %v219 = vld [vmem:[%s5] sm:$0xff]
    %v220 = vld [vmem:[%s5 + $0x8] sm:$0xff]
    %v221 = vld [vmem:[%s5 + $0x10] sm:$0xff]
    %v222 = vld [vmem:[%s5 + $0x18] sm:$0xff]
    %v223 = vld [vmem:[%s5 + $0x20] sm:$0xff]
    %v224 = vld [vmem:[%s5 + $0x28] sm:$0xff]
    %v225 = vld [vmem:[%s5 + $0x30] sm:$0xff]
    %v226 = vld [vmem:[%s5 + $0x38] sm:$0xff]
    %v227 = vld [vmem:[%s5 + $0x40] sm:$0xff]
    %v228 = vld [vmem:[%s5 + $0x48] sm:$0xff]
    %v229 = vld [vmem:[%s5 + $0x50] sm:$0xff]
    %v230 = vld [vmem:[%s5 + $0x58] sm:$0xff]
    %v231 = vld [vmem:[%s5 + $0x60] sm:$0xff]
    %v232 = vld [vmem:[%s5 + $0x68] sm:$0xff]
    %v233 = vld [vmem:[%s5 + $0x70] sm:$0xff]
    %v234 = vld [vmem:[%s5 + $0x78] sm:$0xff]
    %v235 = vld [vmem:[%s6] sm:$0x3f]
    %236 = vmatprep.subr.mxu0 0.0
    %237 = vmatpush1.msra.mxu0 %v234
    %238 = vmatprep.subr.mxu0 0.0
    %239 = vmatpush1.msra.mxu0 %v233
    %240 = vmatprep.subr.mxu0 0.0
    %241 = vmatpush1.msra.mxu0 %v232
    %242 = vmatprep.subr.mxu0 0.0
    %243 = vmatpush1.msra.mxu0 %v231
    %244 = vmatprep.subr.mxu0 0.0
    %245 = vmatpush1.msra.mxu0 %v230
    %246 = vmatprep.subr.mxu0 0.0
    %247 = vmatpush1.msra.mxu0 %v229
    %248 = vmatprep.subr.mxu0 0.0
    %249 = vmatpush1.msra.mxu0 %v228
    %250 = vmatprep.subr.mxu0 0.0
    %251 = vmatpush1.msra.mxu0 %v227
    %252 = vmatprep.subr.mxu0 0.0
    %253 = vmatpush1.msra.mxu0 %v226
    %254 = vmatprep.subr.mxu0 0.0
    %255 = vmatpush1.msra.mxu0 %v225
    %256 = vmatprep.subr.mxu0 0.0
    %257 = vmatpush1.msra.mxu0 %v224
    %258 = vmatprep.subr.mxu0 0.0
    %259 = vmatpush1.msra.mxu0 %v223
    %260 = vmatprep.subr.mxu0 0.0
    %261 = vmatpush1.msra.mxu0 %v222
    %262 = vmatprep.subr.mxu0 0.0
    %263 = vmatpush1.msra.mxu0 %v221
    %264 = vmatprep.subr.mxu0 0.0
    %265 = vmatpush1.msra.mxu0 %v220
    %266 = vmatprep.subr.mxu0 0.0
    %267 = vmatpush1.msra.mxu0 %v219
    %268 = vmatprep.subr.mxu0 0.0
    %269 = vmatpush2.msra.mxu0 0.0
    %270 = vmatprep.subr.mxu0 0.0
    %271 = vmatpush2.msra.mxu0 0.0
    %272 = vmatprep.subr.mxu0 0.0
    %273 = vmatpush2.msra.mxu0 0.0
    %274 = vmatprep.subr.mxu0 0.0
    %275 = vmatpush2.msra.mxu0 0.0
    %276 = vmatprep.subr.mxu0 0.0
    %277 = vmatpush2.msra.mxu0 0.0
    %278 = vmatprep.subr.mxu0 0.0
    %279 = vmatpush2.msra.mxu0 0.0
    %280 = vmatprep.subr.mxu0 0.0
    %281 = vmatpush2.msra.mxu0 0.0
    %282 = vmatprep.subr.mxu0 0.0
    %283 = vmatpush2.msra.mxu0 0.0
    %284 = vmatprep.subr.mxu0 0.0
    %285 = vmatpush2.msra.mxu0 0.0
    %286 = vmatprep.subr.mxu0 0.0
    %287 = vmatpush2.msra.mxu0 0.0
    %288 = vmatprep.subr.mxu0 0.0
    %289 = vmatpush2.msra.mxu0 0.0
    %290 = vmatprep.subr.mxu0 0.0
    %291 = vmatpush2.msra.mxu0 0.0
    %292 = vmatprep.subr.mxu0 0.0
    %293 = vmatpush2.msra.mxu0 0.0
    %294 = vmatprep.subr.mxu0 0.0
    %295 = vmatpush2.msra.mxu0 0.0
    %296 = vmatprep.subr.mxu0 0.0
    %297 = vmatpush2.msra.mxu0 0.0
    %298 = vmatprep.subr.mxu0 0.0
    %299 = vmatpush2.msra.mxu0 0.0
    %300 = vmatprep.mubr.f32.mxu0 0.0
    %301 = vmatmul.mubr.f32.gmra.mxu0 %v38
    %v302 = vpop.f32.mrf.mxu0
    %v303 = vadd.f32 0.0, %v302
    %v304 = vpop.f32.mrf.mxu0
    %305 = vdwg.mxu0
    %307 = vset.pattern.permute.xlu0 0
    %308 = vperm.xlu0 %307, %v303
    %v309 = vpop.permute.xlu0 %308
    %v311 = vmul.f32 %v38, %v309
    %v312 = vlaneseq
    %v313 = vshrl.u32 %v312, 7
    %v314 = vsub.s32 0, %v313
    %v315 = vrot.slane %v235, %v314
    %v316 = vadd.f32 %v311, %v315
    %v317 = vadd.f32 %v316, %v38
    %334 = vrot.lane.b32.xlu0 %v219, 127
    %v335 = vpop.permute.xlu0 %334
    %336 = vrot.lane.b32.xlu0 %v220, 127
    %v337 = vpop.permute.xlu0 %336
    %338 = vrot.lane.b32.xlu0 %v221, 127
    %v339 = vpop.permute.xlu0 %338
    %340 = vrot.lane.b32.xlu0 %v222, 127
    %v341 = vpop.permute.xlu0 %340
    %342 = vrot.lane.b32.xlu0 %v223, 127
    %v343 = vpop.permute.xlu0 %342
    %344 = vrot.lane.b32.xlu0 %v224, 127
    %v345 = vpop.permute.xlu0 %344
    %346 = vrot.lane.b32.xlu0 %v225, 127
    %v347 = vpop.permute.xlu0 %346
    %348 = vrot.lane.b32.xlu0 %v226, 127
    %v349 = vpop.permute.xlu0 %348
    %350 = vrot.lane.b32.xlu0 %v227, 127
    %v351 = vpop.permute.xlu0 %350
    %352 = vrot.lane.b32.xlu0 %v228, 127
    %v353 = vpop.permute.xlu0 %352
    %354 = vrot.lane.b32.xlu0 %v229, 127
    %v355 = vpop.permute.xlu0 %354
    %356 = vrot.lane.b32.xlu0 %v230, 127
    %v357 = vpop.permute.xlu0 %356
    %358 = vrot.lane.b32.xlu0 %v231, 127
    %v359 = vpop.permute.xlu0 %358
    %360 = vrot.lane.b32.xlu0 %v232, 127
    %v361 = vpop.permute.xlu0 %360
    %362 = vrot.lane.b32.xlu0 %v233, 127
    %v363 = vpop.permute.xlu0 %362
    %364 = vrot.lane.b32.xlu0 %v234, 127
    %v365 = vpop.permute.xlu0 %364
    %382 = vmatprep.subr.mxu0 0.0
    %383 = vmatpush1.msra.mxu0 %v365
    %384 = vmatprep.subr.mxu0 0.0
    %385 = vmatpush1.msra.mxu0 %v363
    %386 = vmatprep.subr.mxu0 0.0
    %387 = vmatpush1.msra.mxu0 %v361
    %388 = vmatprep.subr.mxu0 0.0
    %389 = vmatpush1.msra.mxu0 %v359
    %390 = vmatprep.subr.mxu0 0.0
    %391 = vmatpush1.msra.mxu0 %v357
    %392 = vmatprep.subr.mxu0 0.0
    %393 = vmatpush1.msra.mxu0 %v355
    %394 = vmatprep.subr.mxu0 0.0
    %395 = vmatpush1.msra.mxu0 %v353
    %396 = vmatprep.subr.mxu0 0.0
    %397 = vmatpush1.msra.mxu0 %v351
    %398 = vmatprep.subr.mxu0 0.0
    %399 = vmatpush1.msra.mxu0 %v349
    %400 = vmatprep.subr.mxu0 0.0
    %401 = vmatpush1.msra.mxu0 %v347
    %402 = vmatprep.subr.mxu0 0.0
    %403 = vmatpush1.msra.mxu0 %v345
    %404 = vmatprep.subr.mxu0 0.0
    %405 = vmatpush1.msra.mxu0 %v343
    %406 = vmatprep.subr.mxu0 0.0
    %407 = vmatpush1.msra.mxu0 %v341
    %408 = vmatprep.subr.mxu0 0.0
    %409 = vmatpush1.msra.mxu0 %v339
    %410 = vmatprep.subr.mxu0 0.0
    %411 = vmatpush1.msra.mxu0 %v337
    %412 = vmatprep.subr.mxu0 0.0
    %413 = vmatpush1.msra.mxu0 %v335
    %414 = vmatprep.subr.mxu0 0.0
    %415 = vmatpush2.msra.mxu0 0.0
    %416 = vmatprep.subr.mxu0 0.0
    %417 = vmatpush2.msra.mxu0 0.0
    %418 = vmatprep.subr.mxu0 0.0
    %419 = vmatpush2.msra.mxu0 0.0
    %420 = vmatprep.subr.mxu0 0.0
    %421 = vmatpush2.msra.mxu0 0.0
    %422 = vmatprep.subr.mxu0 0.0
    %423 = vmatpush2.msra.mxu0 0.0
    %424 = vmatprep.subr.mxu0 0.0
    %425 = vmatpush2.msra.mxu0 0.0
    %426 = vmatprep.subr.mxu0 0.0
    %427 = vmatpush2.msra.mxu0 0.0
    %428 = vmatprep.subr.mxu0 0.0
    %429 = vmatpush2.msra.mxu0 0.0
    %430 = vmatprep.subr.mxu0 0.0
    %431 = vmatpush2.msra.mxu0 0.0
    %432 = vmatprep.subr.mxu0 0.0
    %433 = vmatpush2.msra.mxu0 0.0
    %434 = vmatprep.subr.mxu0 0.0
    %435 = vmatpush2.msra.mxu0 0.0
    %436 = vmatprep.subr.mxu0 0.0
    %437 = vmatpush2.msra.mxu0 0.0
    %438 = vmatprep.subr.mxu0 0.0
    %439 = vmatpush2.msra.mxu0 0.0
    %440 = vmatprep.subr.mxu0 0.0
    %441 = vmatpush2.msra.mxu0 0.0
    %442 = vmatprep.subr.mxu0 0.0
    %443 = vmatpush2.msra.mxu0 0.0
    %444 = vmatprep.subr.mxu0 0.0
    %445 = vmatpush2.msra.mxu0 0.0
    %446 = vmatprep.mubr.f32.mxu0 0.0
    %447 = vmatmul.mubr.f32.gmra.mxu0 %v317
    %v448 = vpop.f32.mrf.mxu0
    %v449 = vadd.f32 0.0, %v448
    %v450 = vpop.f32.mrf.mxu0
    %451 = vdwg.mxu0
    %453 = vset.pattern.permute.xlu0 0
    %454 = vperm.xlu0 %453, %v449
    %v455 = vpop.permute.xlu0 %454
    %v457 = vmul.f32 %v38, %v455
    %v458 = vlaneseq
    %v459 = vshrl.u32 %v458, 7
    %v460 = vsub.s32 1, %v459
    %v461 = vrot.slane %v235, %v460
    %v462 = vadd.f32 %v457, %v461
    %v463 = vadd.f32 %v462, %v317
    %464 = vrot.lane.b32.xlu0 %v219, 126
    %v465 = vpop.permute.xlu0 %464
    %466 = vrot.lane.b32.xlu0 %v220, 126
    %v467 = vpop.permute.xlu0 %466
    %468 = vrot.lane.b32.xlu0 %v221, 126
    %v469 = vpop.permute.xlu0 %468
    %470 = vrot.lane.b32.xlu0 %v222, 126
    %v471 = vpop.permute.xlu0 %470
    %472 = vrot.lane.b32.xlu0 %v223, 126
    %v473 = vpop.permute.xlu0 %472
    %474 = vrot.lane.b32.xlu0 %v224, 126
    %v475 = vpop.permute.xlu0 %474
    %476 = vrot.lane.b32.xlu0 %v225, 126
    %v477 = vpop.permute.xlu0 %476
    %478 = vrot.lane.b32.xlu0 %v226, 126
    %v479 = vpop.permute.xlu0 %478
    %480 = vrot.lane.b32.xlu0 %v227, 126
    %v481 = vpop.permute.xlu0 %480
    %482 = vrot.lane.b32.xlu0 %v228, 126
    %v483 = vpop.permute.xlu0 %482
    %484 = vrot.lane.b32.xlu0 %v229, 126
    %v485 = vpop.permute.xlu0 %484
    %486 = vrot.lane.b32.xlu0 %v230, 126
    %v487 = vpop.permute.xlu0 %486
    %488 = vrot.lane.b32.xlu0 %v231, 126
    %v489 = vpop.permute.xlu0 %488
    %490 = vrot.lane.b32.xlu0 %v232, 126
    %v491 = vpop.permute.xlu0 %490
    %492 = vrot.lane.b32.xlu0 %v233, 126
    %v493 = vpop.permute.xlu0 %492
    %494 = vrot.lane.b32.xlu0 %v234, 126
    %v495 = vpop.permute.xlu0 %494
    %512 = vmatprep.subr.mxu0 0.0
    %513 = vmatpush1.msra.mxu0 %v495
    %514 = vmatprep.subr.mxu0 0.0
    %515 = vmatpush1.msra.mxu0 %v493
    %516 = vmatprep.subr.mxu0 0.0
    %517 = vmatpush1.msra.mxu0 %v491
    %518 = vmatprep.subr.mxu0 0.0
    %519 = vmatpush1.msra.mxu0 %v489
    %520 = vmatprep.subr.mxu0 0.0
    %521 = vmatpush1.msra.mxu0 %v487
    %522 = vmatprep.subr.mxu0 0.0
    %523 = vmatpush1.msra.mxu0 %v485
    %524 = vmatprep.subr.mxu0 0.0
    %525 = vmatpush1.msra.mxu0 %v483
    %526 = vmatprep.subr.mxu0 0.0
    %527 = vmatpush1.msra.mxu0 %v481
    %528 = vmatprep.subr.mxu0 0.0
    %529 = vmatpush1.msra.mxu0 %v479
    %530 = vmatprep.subr.mxu0 0.0
    %531 = vmatpush1.msra.mxu0 %v477
    %532 = vmatprep.subr.mxu0 0.0
    %533 = vmatpush1.msra.mxu0 %v475
    %534 = vmatprep.subr.mxu0 0.0
    %535 = vmatpush1.msra.mxu0 %v473
    %536 = vmatprep.subr.mxu0 0.0
    %537 = vmatpush1.msra.mxu0 %v471
    %538 = vmatprep.subr.mxu0 0.0
    %539 = vmatpush1.msra.mxu0 %v469
    %540 = vmatprep.subr.mxu0 0.0
    %541 = vmatpush1.msra.mxu0 %v467
    %542 = vmatprep.subr.mxu0 0.0
    %543 = vmatpush1.msra.mxu0 %v465
    %544 = vmatprep.subr.mxu0 0.0
    %545 = vmatpush2.msra.mxu0 0.0
    %546 = vmatprep.subr.mxu0 0.0
    %547 = vmatpush2.msra.mxu0 0.0
    %548 = vmatprep.subr.mxu0 0.0
    %549 = vmatpush2.msra.mxu0 0.0
    %550 = vmatprep.subr.mxu0 0.0
    %551 = vmatpush2.msra.mxu0 0.0
    %552 = vmatprep.subr.mxu0 0.0
    %553 = vmatpush2.msra.mxu0 0.0
    %554 = vmatprep.subr.mxu0 0.0
    %555 = vmatpush2.msra.mxu0 0.0
    %556 = vmatprep.subr.mxu0 0.0
    %557 = vmatpush2.msra.mxu0 0.0
    %558 = vmatprep.subr.mxu0 0.0
    %559 = vmatpush2.msra.mxu0 0.0
    %560 = vmatprep.subr.mxu0 0.0
    %561 = vmatpush2.msra.mxu0 0.0
    %562 = vmatprep.subr.mxu0 0.0
    %563 = vmatpush2.msra.mxu0 0.0
    %564 = vmatprep.subr.mxu0 0.0
    %565 = vmatpush2.msra.mxu0 0.0
    %566 = vmatprep.subr.mxu0 0.0
    %567 = vmatpush2.msra.mxu0 0.0
    %568 = vmatprep.subr.mxu0 0.0
    %569 = vmatpush2.msra.mxu0 0.0
    %570 = vmatprep.subr.mxu0 0.0
    %571 = vmatpush2.msra.mxu0 0.0
    %572 = vmatprep.subr.mxu0 0.0
    %573 = vmatpush2.msra.mxu0 0.0
    %574 = vmatprep.subr.mxu0 0.0
    %575 = vmatpush2.msra.mxu0 0.0
    %576 = vmatprep.mubr.f32.mxu0 0.0
    %577 = vmatmul.mubr.f32.gmra.mxu0 %v463
    %v578 = vpop.f32.mrf.mxu0
    %v579 = vadd.f32 0.0, %v578
    %v580 = vpop.f32.mrf.mxu0
    %581 = vdwg.mxu0
    %583 = vset.pattern.permute.xlu0 0
    %584 = vperm.xlu0 %583, %v579
    %v585 = vpop.permute.xlu0 %584
    %v587 = vmul.f32 %v38, %v585
    %v588 = vlaneseq
    %v589 = vshrl.u32 %v588, 7
    %v590 = vsub.s32 2, %v589
    %v591 = vrot.slane %v235, %v590
    %v592 = vadd.f32 %v587, %v591
    %v593 = vadd.f32 %v592, %v463
    %594 = vrot.lane.b32.xlu0 %v219, 125
    %v595 = vpop.permute.xlu0 %594
    %596 = vrot.lane.b32.xlu0 %v220, 125
    %v597 = vpop.permute.xlu0 %596
    %598 = vrot.lane.b32.xlu0 %v221, 125
    %v599 = vpop.permute.xlu0 %598
    %600 = vrot.lane.b32.xlu0 %v222, 125
    %v601 = vpop.permute.xlu0 %600
    %602 = vrot.lane.b32.xlu0 %v223, 125
    %v603 = vpop.permute.xlu0 %602
    %604 = vrot.lane.b32.xlu0 %v224, 125
    %v605 = vpop.permute.xlu0 %604
    %606 = vrot.lane.b32.xlu0 %v225, 125
    %v607 = vpop.permute.xlu0 %606
    %608 = vrot.lane.b32.xlu0 %v226, 125
    %v609 = vpop.permute.xlu0 %608
    %610 = vrot.lane.b32.xlu0 %v227, 125
    %v611 = vpop.permute.xlu0 %610
    %612 = vrot.lane.b32.xlu0 %v228, 125
    %v613 = vpop.permute.xlu0 %612
    %614 = vrot.lane.b32.xlu0 %v229, 125
    %v615 = vpop.permute.xlu0 %614
    %616 = vrot.lane.b32.xlu0 %v230, 125
    %v617 = vpop.permute.xlu0 %616
    %618 = vrot.lane.b32.xlu0 %v231, 125
    %v619 = vpop.permute.xlu0 %618
    %620 = vrot.lane.b32.xlu0 %v232, 125
    %v621 = vpop.permute.xlu0 %620
    %622 = vrot.lane.b32.xlu0 %v233, 125
    %v623 = vpop.permute.xlu0 %622
    %624 = vrot.lane.b32.xlu0 %v234, 125
    %v625 = vpop.permute.xlu0 %624
    %642 = vmatprep.subr.mxu0 0.0
    %643 = vmatpush1.msra.mxu0 %v625
    %644 = vmatprep.subr.mxu0 0.0
    %645 = vmatpush1.msra.mxu0 %v623
    %646 = vmatprep.subr.mxu0 0.0
    %647 = vmatpush1.msra.mxu0 %v621
    %648 = vmatprep.subr.mxu0 0.0
    %649 = vmatpush1.msra.mxu0 %v619
    %650 = vmatprep.subr.mxu0 0.0
    %651 = vmatpush1.msra.mxu0 %v617
    %652 = vmatprep.subr.mxu0 0.0
    %653 = vmatpush1.msra.mxu0 %v615
    %654 = vmatprep.subr.mxu0 0.0
    %655 = vmatpush1.msra.mxu0 %v613
    %656 = vmatprep.subr.mxu0 0.0
    %657 = vmatpush1.msra.mxu0 %v611
    %658 = vmatprep.subr.mxu0 0.0
    %659 = vmatpush1.msra.mxu0 %v609
    %660 = vmatprep.subr.mxu0 0.0
    %661 = vmatpush1.msra.mxu0 %v607
    %662 = vmatprep.subr.mxu0 0.0
    %663 = vmatpush1.msra.mxu0 %v605
    %664 = vmatprep.subr.mxu0 0.0
    %665 = vmatpush1.msra.mxu0 %v603
    %666 = vmatprep.subr.mxu0 0.0
    %667 = vmatpush1.msra.mxu0 %v601
    %668 = vmatprep.subr.mxu0 0.0
    %669 = vmatpush1.msra.mxu0 %v599
    %670 = vmatprep.subr.mxu0 0.0
    %671 = vmatpush1.msra.mxu0 %v597
    %672 = vmatprep.subr.mxu0 0.0
    %673 = vmatpush1.msra.mxu0 %v595
    %674 = vmatprep.subr.mxu0 0.0
    %675 = vmatpush2.msra.mxu0 0.0
    %676 = vmatprep.subr.mxu0 0.0
    %677 = vmatpush2.msra.mxu0 0.0
    %678 = vmatprep.subr.mxu0 0.0
    %679 = vmatpush2.msra.mxu0 0.0
    %680 = vmatprep.subr.mxu0 0.0
    %681 = vmatpush2.msra.mxu0 0.0
    %682 = vmatprep.subr.mxu0 0.0
    %683 = vmatpush2.msra.mxu0 0.0
    %684 = vmatprep.subr.mxu0 0.0
    %685 = vmatpush2.msra.mxu0 0.0
    %686 = vmatprep.subr.mxu0 0.0
    %687 = vmatpush2.msra.mxu0 0.0
    %688 = vmatprep.subr.mxu0 0.0
    %689 = vmatpush2.msra.mxu0 0.0
    %690 = vmatprep.subr.mxu0 0.0
    %691 = vmatpush2.msra.mxu0 0.0
    %692 = vmatprep.subr.mxu0 0.0
    %693 = vmatpush2.msra.mxu0 0.0
    %694 = vmatprep.subr.mxu0 0.0
    %695 = vmatpush2.msra.mxu0 0.0
    %696 = vmatprep.subr.mxu0 0.0
    %697 = vmatpush2.msra.mxu0 0.0
    %698 = vmatprep.subr.mxu0 0.0
    %699 = vmatpush2.msra.mxu0 0.0
    %700 = vmatprep.subr.mxu0 0.0
    %701 = vmatpush2.msra.mxu0 0.0
    %702 = vmatprep.subr.mxu0 0.0
    %703 = vmatpush2.msra.mxu0 0.0
    %704 = vmatprep.subr.mxu0 0.0
    %705 = vmatpush2.msra.mxu0 0.0
    %706 = vmatprep.mubr.f32.mxu0 0.0
    %707 = vmatmul.mubr.f32.gmra.mxu0 %v593
    %v708 = vpop.f32.mrf.mxu0
    %v709 = vadd.f32 0.0, %v708
    %v710 = vpop.f32.mrf.mxu0
    %711 = vdwg.mxu0
    %713 = vset.pattern.permute.xlu0 0
    %714 = vperm.xlu0 %713, %v709
    %v715 = vpop.permute.xlu0 %714
    %v717 = vmul.f32 %v38, %v715
    %v718 = vlaneseq
    %v719 = vshrl.u32 %v718, 7
    %v720 = vsub.s32 3, %v719
    %v721 = vrot.slane %v235, %v720
    %v722 = vadd.f32 %v717, %v721
    %v723 = vadd.f32 %v722, %v593
    %724 = vrot.lane.b32.xlu0 %v219, 124
    %v725 = vpop.permute.xlu0 %724
    %726 = vrot.lane.b32.xlu0 %v220, 124
    %v727 = vpop.permute.xlu0 %726
    %728 = vrot.lane.b32.xlu0 %v221, 124
    %v729 = vpop.permute.xlu0 %728
    %730 = vrot.lane.b32.xlu0 %v222, 124
    %v731 = vpop.permute.xlu0 %730
    %732 = vrot.lane.b32.xlu0 %v223, 124
    %v733 = vpop.permute.xlu0 %732
    %734 = vrot.lane.b32.xlu0 %v224, 124
    %v735 = vpop.permute.xlu0 %734
    %736 = vrot.lane.b32.xlu0 %v225, 124
    %v737 = vpop.permute.xlu0 %736
    %738 = vrot.lane.b32.xlu0 %v226, 124
    %v739 = vpop.permute.xlu0 %738
    %740 = vrot.lane.b32.xlu0 %v227, 124
    %v741 = vpop.permute.xlu0 %740
    %742 = vrot.lane.b32.xlu0 %v228, 124
    %v743 = vpop.permute.xlu0 %742
    %744 = vrot.lane.b32.xlu0 %v229, 124
    %v745 = vpop.permute.xlu0 %744
    %746 = vrot.lane.b32.xlu0 %v230, 124
    %v747 = vpop.permute.xlu0 %746
    %748 = vrot.lane.b32.xlu0 %v231, 124
    %v749 = vpop.permute.xlu0 %748
    %750 = vrot.lane.b32.xlu0 %v232, 124
    %v751 = vpop.permute.xlu0 %750
    %752 = vrot.lane.b32.xlu0 %v233, 124
    %v753 = vpop.permute.xlu0 %752
    %754 = vrot.lane.b32.xlu0 %v234, 124
    %v755 = vpop.permute.xlu0 %754
    %772 = vmatprep.subr.mxu0 0.0
    %773 = vmatpush1.msra.mxu0 %v755
    %774 = vmatprep.subr.mxu0 0.0
    %775 = vmatpush1.msra.mxu0 %v753
    %776 = vmatprep.subr.mxu0 0.0
    %777 = vmatpush1.msra.mxu0 %v751
    %778 = vmatprep.subr.mxu0 0.0
    %779 = vmatpush1.msra.mxu0 %v749
    %780 = vmatprep.subr.mxu0 0.0
    %781 = vmatpush1.msra.mxu0 %v747
    %782 = vmatprep.subr.mxu0 0.0
    %783 = vmatpush1.msra.mxu0 %v745
    %784 = vmatprep.subr.mxu0 0.0
    %785 = vmatpush1.msra.mxu0 %v743
    %786 = vmatprep.subr.mxu0 0.0
    %787 = vmatpush1.msra.mxu0 %v741
    %788 = vmatprep.subr.mxu0 0.0
    %789 = vmatpush1.msra.mxu0 %v739
    %790 = vmatprep.subr.mxu0 0.0
    %791 = vmatpush1.msra.mxu0 %v737
    %792 = vmatprep.subr.mxu0 0.0
    %793 = vmatpush1.msra.mxu0 %v735
    %794 = vmatprep.subr.mxu0 0.0
    %795 = vmatpush1.msra.mxu0 %v733
    %796 = vmatprep.subr.mxu0 0.0
    %797 = vmatpush1.msra.mxu0 %v731
    %798 = vmatprep.subr.mxu0 0.0
    %799 = vmatpush1.msra.mxu0 %v729
    %800 = vmatprep.subr.mxu0 0.0
    %801 = vmatpush1.msra.mxu0 %v727
    %802 = vmatprep.subr.mxu0 0.0
    %803 = vmatpush1.msra.mxu0 %v725
    %804 = vmatprep.subr.mxu0 0.0
    %805 = vmatpush2.msra.mxu0 0.0
    %806 = vmatprep.subr.mxu0 0.0
    %807 = vmatpush2.msra.mxu0 0.0
    %808 = vmatprep.subr.mxu0 0.0
    %809 = vmatpush2.msra.mxu0 0.0
    %810 = vmatprep.subr.mxu0 0.0
    %811 = vmatpush2.msra.mxu0 0.0
    %812 = vmatprep.subr.mxu0 0.0
    %813 = vmatpush2.msra.mxu0 0.0
    %814 = vmatprep.subr.mxu0 0.0
    %815 = vmatpush2.msra.mxu0 0.0
    %816 = vmatprep.subr.mxu0 0.0
    %817 = vmatpush2.msra.mxu0 0.0
    %818 = vmatprep.subr.mxu0 0.0
    %819 = vmatpush2.msra.mxu0 0.0
    %820 = vmatprep.subr.mxu0 0.0
    %821 = vmatpush2.msra.mxu0 0.0
    %822 = vmatprep.subr.mxu0 0.0
    %823 = vmatpush2.msra.mxu0 0.0
    %824 = vmatprep.subr.mxu0 0.0
    %825 = vmatpush2.msra.mxu0 0.0
    %826 = vmatprep.subr.mxu0 0.0
    %827 = vmatpush2.msra.mxu0 0.0
    %828 = vmatprep.subr.mxu0 0.0
    %829 = vmatpush2.msra.mxu0 0.0
    %830 = vmatprep.subr.mxu0 0.0
    %831 = vmatpush2.msra.mxu0 0.0
    %832 = vmatprep.subr.mxu0 0.0
    %833 = vmatpush2.msra.mxu0 0.0
    %834 = vmatprep.subr.mxu0 0.0
    %835 = vmatpush2.msra.mxu0 0.0
    %836 = vmatprep.mubr.f32.mxu0 0.0
    %837 = vmatmul.mubr.f32.gmra.mxu0 %v723
    %v838 = vpop.f32.mrf.mxu0
    %v839 = vadd.f32 0.0, %v838
    %v840 = vpop.f32.mrf.mxu0
    %841 = vdwg.mxu0
    %843 = vset.pattern.permute.xlu0 0
    %844 = vperm.xlu0 %843, %v839
    %v845 = vpop.permute.xlu0 %844
    %v847 = vmul.f32 %v38, %v845
    %v848 = vlaneseq
    %v849 = vshrl.u32 %v848, 7
    %v850 = vsub.s32 4, %v849
    %v851 = vrot.slane %v235, %v850
    %v852 = vadd.f32 %v847, %v851
    %v853 = vadd.f32 %v852, %v723
    %854 = vrot.lane.b32.xlu0 %v219, 123
    %v855 = vpop.permute.xlu0 %854
    %856 = vrot.lane.b32.xlu0 %v220, 123
    %v857 = vpop.permute.xlu0 %856
    %858 = vrot.lane.b32.xlu0 %v221, 123
    %v859 = vpop.permute.xlu0 %858
    %860 = vrot.lane.b32.xlu0 %v222, 123
    %v861 = vpop.permute.xlu0 %860
    %862 = vrot.lane.b32.xlu0 %v223, 123
    %v863 = vpop.permute.xlu0 %862
    %864 = vrot.lane.b32.xlu0 %v224, 123
    %v865 = vpop.permute.xlu0 %864
    %866 = vrot.lane.b32.xlu0 %v225, 123
    %v867 = vpop.permute.xlu0 %866
    %868 = vrot.lane.b32.xlu0 %v226, 123
    %v869 = vpop.permute.xlu0 %868
    %870 = vrot.lane.b32.xlu0 %v227, 123
    %v871 = vpop.permute.xlu0 %870
    %872 = vrot.lane.b32.xlu0 %v228, 123
    %v873 = vpop.permute.xlu0 %872
    %874 = vrot.lane.b32.xlu0 %v229, 123
    %v875 = vpop.permute.xlu0 %874
    %876 = vrot.lane.b32.xlu0 %v230, 123
    %v877 = vpop.permute.xlu0 %876
    %878 = vrot.lane.b32.xlu0 %v231, 123
    %v879 = vpop.permute.xlu0 %878
    %880 = vrot.lane.b32.xlu0 %v232, 123
    %v881 = vpop.permute.xlu0 %880
    %882 = vrot.lane.b32.xlu0 %v233, 123
    %v883 = vpop.permute.xlu0 %882
    %884 = vrot.lane.b32.xlu0 %v234, 123
    %v885 = vpop.permute.xlu0 %884
    %902 = vmatprep.subr.mxu0 0.0
    %903 = vmatpush1.msra.mxu0 %v885
    %904 = vmatprep.subr.mxu0 0.0
    %905 = vmatpush1.msra.mxu0 %v883
    %906 = vmatprep.subr.mxu0 0.0
    %907 = vmatpush1.msra.mxu0 %v881
    %908 = vmatprep.subr.mxu0 0.0
    %909 = vmatpush1.msra.mxu0 %v879
    %910 = vmatprep.subr.mxu0 0.0
    %911 = vmatpush1.msra.mxu0 %v877
    %912 = vmatprep.subr.mxu0 0.0
    %913 = vmatpush1.msra.mxu0 %v875
    %914 = vmatprep.subr.mxu0 0.0
    %915 = vmatpush1.msra.mxu0 %v873
    %916 = vmatprep.subr.mxu0 0.0
    %917 = vmatpush1.msra.mxu0 %v871
    %918 = vmatprep.subr.mxu0 0.0
    %919 = vmatpush1.msra.mxu0 %v869
    %920 = vmatprep.subr.mxu0 0.0
    %921 = vmatpush1.msra.mxu0 %v867
    %922 = vmatprep.subr.mxu0 0.0
    %923 = vmatpush1.msra.mxu0 %v865
    %924 = vmatprep.subr.mxu0 0.0
    %925 = vmatpush1.msra.mxu0 %v863
    %926 = vmatprep.subr.mxu0 0.0
    %927 = vmatpush1.msra.mxu0 %v861
    %928 = vmatprep.subr.mxu0 0.0
    %929 = vmatpush1.msra.mxu0 %v859
    %930 = vmatprep.subr.mxu0 0.0
    %931 = vmatpush1.msra.mxu0 %v857
    %932 = vmatprep.subr.mxu0 0.0
    %933 = vmatpush1.msra.mxu0 %v855
    %934 = vmatprep.subr.mxu0 0.0
    %935 = vmatpush2.msra.mxu0 0.0
    %936 = vmatprep.subr.mxu0 0.0
    %937 = vmatpush2.msra.mxu0 0.0
    %938 = vmatprep.subr.mxu0 0.0
    %939 = vmatpush2.msra.mxu0 0.0
    %940 = vmatprep.subr.mxu0 0.0
    %941 = vmatpush2.msra.mxu0 0.0
    %942 = vmatprep.subr.mxu0 0.0
    %943 = vmatpush2.msra.mxu0 0.0
    %944 = vmatprep.subr.mxu0 0.0
    %945 = vmatpush2.msra.mxu0 0.0
    %946 = vmatprep.subr.mxu0 0.0
    %947 = vmatpush2.msra.mxu0 0.0
    %948 = vmatprep.subr.mxu0 0.0
    %949 = vmatpush2.msra.mxu0 0.0
    %950 = vmatprep.subr.mxu0 0.0
    %951 = vmatpush2.msra.mxu0 0.0
    %952 = vmatprep.subr.mxu0 0.0
    %953 = vmatpush2.msra.mxu0 0.0
    %954 = vmatprep.subr.mxu0 0.0
    %955 = vmatpush2.msra.mxu0 0.0
    %956 = vmatprep.subr.mxu0 0.0
    %957 = vmatpush2.msra.mxu0 0.0
    %958 = vmatprep.subr.mxu0 0.0
    %959 = vmatpush2.msra.mxu0 0.0
    %960 = vmatprep.subr.mxu0 0.0
    %961 = vmatpush2.msra.mxu0 0.0
    %962 = vmatprep.subr.mxu0 0.0
    %963 = vmatpush2.msra.mxu0 0.0
    %964 = vmatprep.subr.mxu0 0.0
    %965 = vmatpush2.msra.mxu0 0.0
    %966 = vmatprep.mubr.f32.mxu0 0.0
    %967 = vmatmul.mubr.f32.gmra.mxu0 %v853
    %v968 = vpop.f32.mrf.mxu0
    %v969 = vadd.f32 0.0, %v968
    %v970 = vpop.f32.mrf.mxu0
    %971 = vdwg.mxu0
    %973 = vset.pattern.permute.xlu0 0
    %974 = vperm.xlu0 %973, %v969
    %v975 = vpop.permute.xlu0 %974
    %v977 = vmul.f32 %v38, %v975
    %v978 = vlaneseq
    %v979 = vshrl.u32 %v978, 7
    %v980 = vsub.s32 5, %v979
    %v981 = vrot.slane %v235, %v980
    %v982 = vadd.f32 %v977, %v981
    %v983 = vadd.f32 %v982, %v853
    %v984 = vld [vmem:[%s7] sm:$0xff]
    %v985 = vld [vmem:[%s8] sm:$0xff]
    %v987 = vsel %vm144, %v985, 0
    %v990 = vsel %vm144, %v218, 0
    %992 = vmatprep.subr.mxu0 0.0
    %993 = vmatpush1.xpose.msra.mxu0 0.0
    %994 = vmatprep.subr.mxu0 0.0
    %995 = vmatpush1.xpose.msra.mxu0 0.0
    %996 = vmatprep.subr.mxu0 0.0
    %997 = vmatpush1.xpose.msra.mxu0 0.0
    %998 = vmatprep.subr.mxu0 0.0
    %999 = vmatpush1.xpose.msra.mxu0 0.0
    %1000 = vmatprep.subr.mxu0 0.0
    %1001 = vmatpush1.xpose.msra.mxu0 0.0
    %1002 = vmatprep.subr.mxu0 0.0
    %1003 = vmatpush1.xpose.msra.mxu0 0.0
    %1004 = vmatprep.subr.mxu0 0.0
    %1005 = vmatpush1.xpose.msra.mxu0 0.0
    %1006 = vmatprep.subr.mxu0 0.0
    %1007 = vmatpush1.xpose.msra.mxu0 0.0
    %1008 = vmatprep.subr.mxu0 0.0
    %1009 = vmatpush1.xpose.msra.mxu0 0.0
    %1010 = vmatprep.subr.mxu0 0.0
    %1011 = vmatpush1.xpose.msra.mxu0 0.0
    %1012 = vmatprep.subr.mxu0 0.0
    %1013 = vmatpush1.xpose.msra.mxu0 0.0
    %1014 = vmatprep.subr.mxu0 0.0
    %1015 = vmatpush1.xpose.msra.mxu0 0.0
    %1016 = vmatprep.subr.mxu0 0.0
    %1017 = vmatpush1.xpose.msra.mxu0 0.0
    %1018 = vmatprep.subr.mxu0 0.0
    %1019 = vmatpush1.xpose.msra.mxu0 0.0
    %1020 = vmatprep.subr.mxu0 0.0
    %1021 = vmatpush1.xpose.msra.mxu0 0.0
    %1022 = vmatprep.subr.mxu0 0.0
    %1023 = vmatpush1.xpose.msra.mxu0 %v990
    %1024 = vmatprep.subr.mxu0 0.0
    %1025 = vmatpush2.xpose.msra.mxu0 0.0
    %1026 = vmatprep.subr.mxu0 0.0
    %1027 = vmatpush2.xpose.msra.mxu0 0.0
    %1028 = vmatprep.subr.mxu0 0.0
    %1029 = vmatpush2.xpose.msra.mxu0 0.0
    %1030 = vmatprep.subr.mxu0 0.0
    %1031 = vmatpush2.xpose.msra.mxu0 0.0
    %1032 = vmatprep.subr.mxu0 0.0
    %1033 = vmatpush2.xpose.msra.mxu0 0.0
    %1034 = vmatprep.subr.mxu0 0.0
    %1035 = vmatpush2.xpose.msra.mxu0 0.0
    %1036 = vmatprep.subr.mxu0 0.0
    %1037 = vmatpush2.xpose.msra.mxu0 0.0
    %1038 = vmatprep.subr.mxu0 0.0
    %1039 = vmatpush2.xpose.msra.mxu0 0.0
    %1040 = vmatprep.subr.mxu0 0.0
    %1041 = vmatpush2.xpose.msra.mxu0 0.0
    %1042 = vmatprep.subr.mxu0 0.0
    %1043 = vmatpush2.xpose.msra.mxu0 0.0
    %1044 = vmatprep.subr.mxu0 0.0
    %1045 = vmatpush2.xpose.msra.mxu0 0.0
    %1046 = vmatprep.subr.mxu0 0.0
    %1047 = vmatpush2.xpose.msra.mxu0 0.0
    %1048 = vmatprep.subr.mxu0 0.0
    %1049 = vmatpush2.xpose.msra.mxu0 0.0
    %1050 = vmatprep.subr.mxu0 0.0
    %1051 = vmatpush2.xpose.msra.mxu0 0.0
    %1052 = vmatprep.subr.mxu0 0.0
    %1053 = vmatpush2.xpose.msra.mxu0 0.0
    %1054 = vmatprep.subr.mxu0 0.0
    %1055 = vmatpush2.xpose.msra.mxu0 0.0
    %1056 = vmatprep.mubr.f32.mxu0 0.0
    %1057 = vmatmul.mubr.f32.gmra.mxu0 %v987
    %v1058 = vpop.f32.mrf.mxu0
    %v1059 = vadd.f32 0.0, %v1058
    %v1060 = vpop.f32.mrf.mxu0
    %1061 = vdwg.mxu0
    %1062 = vmatprep.subr.mxu0 0.0
    %1063 = vmatpush1.xpose.msra.mxu0 0.0
    %1064 = vmatprep.subr.mxu0 0.0
    %1065 = vmatpush1.xpose.msra.mxu0 0.0
    %1066 = vmatprep.subr.mxu0 0.0
    %1067 = vmatpush1.xpose.msra.mxu0 0.0
    %1068 = vmatprep.subr.mxu0 0.0
    %1069 = vmatpush1.xpose.msra.mxu0 0.0
    %1070 = vmatprep.subr.mxu0 0.0
    %1071 = vmatpush1.xpose.msra.mxu0 0.0
    %1072 = vmatprep.subr.mxu0 0.0
    %1073 = vmatpush1.xpose.msra.mxu0 0.0
    %1074 = vmatprep.subr.mxu0 0.0
    %1075 = vmatpush1.xpose.msra.mxu0 0.0
    %1076 = vmatprep.subr.mxu0 0.0
    %1077 = vmatpush1.xpose.msra.mxu0 0.0
    %1078 = vmatprep.subr.mxu0 0.0
    %1079 = vmatpush1.xpose.msra.mxu0 0.0
    %1080 = vmatprep.subr.mxu0 0.0
    %1081 = vmatpush1.xpose.msra.mxu0 0.0
    %1082 = vmatprep.subr.mxu0 0.0
    %1083 = vmatpush1.xpose.msra.mxu0 0.0
    %1084 = vmatprep.subr.mxu0 0.0
    %1085 = vmatpush1.xpose.msra.mxu0 0.0
    %1086 = vmatprep.subr.mxu0 0.0
    %1087 = vmatpush1.xpose.msra.mxu0 0.0
    %1088 = vmatprep.subr.mxu0 0.0
    %1089 = vmatpush1.xpose.msra.mxu0 0.0
    %1090 = vmatprep.subr.mxu0 0.0
    %1091 = vmatpush1.xpose.msra.mxu0 0.0
    %1092 = vmatprep.subr.mxu0 0.0
    %1093 = vmatpush1.xpose.msra.mxu0 %v983
    %1094 = vmatprep.subr.mxu0 0.0
    %1095 = vmatpush2.xpose.msra.mxu0 0.0
    %1096 = vmatprep.subr.mxu0 0.0
    %1097 = vmatpush2.xpose.msra.mxu0 0.0
    %1098 = vmatprep.subr.mxu0 0.0
    %1099 = vmatpush2.xpose.msra.mxu0 0.0
    %1100 = vmatprep.subr.mxu0 0.0
    %1101 = vmatpush2.xpose.msra.mxu0 0.0
    %1102 = vmatprep.subr.mxu0 0.0
    %1103 = vmatpush2.xpose.msra.mxu0 0.0
    %1104 = vmatprep.subr.mxu0 0.0
    %1105 = vmatpush2.xpose.msra.mxu0 0.0
    %1106 = vmatprep.subr.mxu0 0.0
    %1107 = vmatpush2.xpose.msra.mxu0 0.0
    %1108 = vmatprep.subr.mxu0 0.0
    %1109 = vmatpush2.xpose.msra.mxu0 0.0
    %1110 = vmatprep.subr.mxu0 0.0
    %1111 = vmatpush2.xpose.msra.mxu0 0.0
    %1112 = vmatprep.subr.mxu0 0.0
    %1113 = vmatpush2.xpose.msra.mxu0 0.0
    %1114 = vmatprep.subr.mxu0 0.0
    %1115 = vmatpush2.xpose.msra.mxu0 0.0
    %1116 = vmatprep.subr.mxu0 0.0
    %1117 = vmatpush2.xpose.msra.mxu0 0.0
    %1118 = vmatprep.subr.mxu0 0.0
    %1119 = vmatpush2.xpose.msra.mxu0 0.0
    %1120 = vmatprep.subr.mxu0 0.0
    %1121 = vmatpush2.xpose.msra.mxu0 0.0
    %1122 = vmatprep.subr.mxu0 0.0
    %1123 = vmatpush2.xpose.msra.mxu0 0.0
    %1124 = vmatprep.subr.mxu0 0.0
    %1125 = vmatpush2.xpose.msra.mxu0 0.0
    %1126 = vmatprep.mubr.f32.mxu0 0.0
    %1127 = vmatmul.mubr.f32.gmra.mxu0 %v984
    %v1128 = vpop.f32.mrf.mxu0
    %v1129 = vadd.f32 %v1059, %v1128
    %v1130 = vpop.f32.mrf.mxu0
    %1131 = vdwg.mxu0
    %v1132 = vld [vmem:[#allocation2] sm:$0x1]
    %1134 = vset.pattern.permute.xlu0 0
    %1135 = vperm.xlu0 %1134, %v1132
    %v1136 = vpop.permute.xlu0 %1135
    %v1138 = vlaneseq
    %v1139 = vshrl.u32 %v1138, 7
    %v1140 = vsub.s32 0, %v1139
    %v1141 = vrot.slane %v1136, %v1140
    %v1142 = vadd.f32 %v1129, %v1141
    %v1143 = vxor.u32 %v1142, 2147483648
    %v1144 = vmul.f32 %v1143, 1.442695
    %v1145 = vpow.pop %v1144
    %v1146 = vadd.f32 %v1145, 1.0
    %v1147 = vrcp.pop %v1146
    %v1148 = vmul.f32 1.0, %v1147
    %vm1149 = vcmask 57344
    %1150 = vst.msk [vmem:[#allocation3] sm:$0x1] %vm1149, %v1148
    // Predicated region
    $region42: #{dcn_pallas.1} parent=1 // pred_check
      _
    $region43: #{dcn_pallas.1} parent=1 // pred_check_branch
      %1152 = sbr.rel (0) target = $region45
    $region44: #{dcn_pallas.1} parent=1 // pred_region
      %s1154 = ssub.s32 16, 16
      %1155 = vsyncadd [#allocation4], %s1154
      %s1157 = sshll.u32 [#allocation3], 4
      %s1158 = int_to_ptr.vmem [resolvable:$true] %s1157
      %1160 = dma.vmem_to_hbm [thread:$0]  %s1158, 16, %s10, [#allocation4]
    $region45: #{dcn_pallas.1} parent=1 // pred_fallthru
      _
    // Predicated region
    $region46: #{dcn_pallas.1} parent=1 // pred_check
      _
    $region47: #{dcn_pallas.1} parent=1 // pred_check_branch
      %1162 = sbr.rel (0) target = $region49
    $region48: #{dcn_pallas.1} parent=1 // pred_region
      %1163 = dma.done [#allocation4], 16
    $region49: #{dcn_pallas.1} parent=1 // pred_fallthru
      _
    %1164 = vsyncpa [#allocation4], 1

</llo_original>
